<compile_context>
chip_gen: v6e
topology: v6e:2x2x1
jax: 0.10.0
libtpu: 0.0.40
codegen_flags: <defaults>
</compile_context>

<pallas_src>
import functools

import jax
import jax.numpy as jnp
from jax.experimental import pallas as pl
from jax.experimental.pallas import tpu as pltpu

_MiB = 1024 * 1024


def _round_up(v: int, m: int) -> int:
    return ((v + m - 1) // m) * m


def _pick_tile(dim: int, cap: int, align: int) -> int:
    """Largest `align`-multiple tile <= cap that divides `dim` (`dim` is an
    `align`-multiple). Iterates downward in `align` steps (no 512->128 cliff)."""
    if dim <= cap:
        return dim
    t = (cap // align) * align
    while t > align:
        if dim % t == 0:
            return t
        t -= align
    return align


def _vmem_capacity_bytes() -> int:
    try:
        return int(pltpu.get_tpu_info().vmem_capacity_bytes)
    except Exception:
        return 64 * _MiB  # conservative fallback (v7x-sized VMEM)


def _vmem_budgets():
    """(double-buffered working-set budget, scoped vmem_limit_bytes)."""
    cap = _vmem_capacity_bytes()
    if cap >= 100 * _MiB:            # v5e / v6e: 128 MiB physical VMEM
        return 48 * _MiB, 96 * _MiB
    return 24 * _MiB, 32 * _MiB      # v7x: 64 MiB physical VMEM


def _pick_ensemble_block(E, tm, tk, tn, in_itemsize, out_itemsize,
                         use_scratch, budget_bytes):
    """Largest divisor of E whose double-buffered working set fits the budget."""
    def vmem_bytes(e_blk):
        ins = e_blk * (tm * tk + tk * tn + tn) * in_itemsize      # x, w, bias
        outs = e_blk * tm * tn * out_itemsize                     # output block
        scratch = e_blk * tm * tn * 4 if use_scratch else 0       # f32 acc (if any)
        return 2 * (ins + outs) + scratch                         # x2: double-buffering
    for cand in range(E, 0, -1):
        if E % cand == 0 and vmem_bytes(cand) <= budget_bytes:
            return cand
    return 1


def _fc_kernel_f32(x_ref, w_ref, b_ref, o_ref):
    # x_ref: (e_blk, tm, tk)  w_ref: (e_blk, tk, tn)  b_ref: (e_blk, 1, tn)
    # o_ref: (e_blk, tm, tn) float32 -- its index_map is K-invariant, so it is
    # VMEM-resident across the reduction loop and doubles as the accumulator.
    k = pl.program_id(3)

    @pl.when(k == 0)
    def _init():
        o_ref[...] = jnp.zeros_like(o_ref)

    o_ref[...] += jnp.einsum("ebk,ekn->ebn", x_ref[...], w_ref[...],
                             preferred_element_type=jnp.float32)

    @pl.when(k == pl.num_programs(3) - 1)
    def _finalize():
        # activation = ReLU (injected activation in the PyTorch module)
        o_ref[...] = jnp.maximum(o_ref[...] + b_ref[...].astype(jnp.float32), 0.0)


def _fc_kernel_acc(x_ref, w_ref, b_ref, o_ref, acc_ref):
    # Low-precision output path: accumulate in an f32 scratch, cast on writeback.
    k = pl.program_id(3)

    @pl.when(k == 0)
    def _init():
        acc_ref[...] = jnp.zeros_like(acc_ref)

    acc_ref[...] += jnp.einsum("ebk,ekn->ebn", x_ref[...], w_ref[...],
                               preferred_element_type=jnp.float32)

    @pl.when(k == pl.num_programs(3) - 1)
    def _finalize():
        a = acc_ref[...] + b_ref[...].astype(jnp.float32)
        o_ref[...] = jnp.maximum(a, 0.0).astype(o_ref.dtype)


def make_fc_layer(weight, bias):
    """Build the FCLayer forward: relu(bmm(x, weight) + bias[:, None, :]).

    Parameters are padded to lane-dense shapes ONCE here (hoisted out of the
    per-call path); the returned callable pads only the activations.
    """
    E, Din, Dout = weight.shape
    Dk = _round_up(Din, 128)
    Dn = _round_up(Dout, 128)

    wp = (jnp.pad(weight, ((0, 0), (0, Dk - Din), (0, Dn - Dout)))
          if (Dk != Din or Dn != Dout) else weight)
    bp = (jnp.pad(bias, ((0, 0), (0, Dn - Dout))) if Dn != Dout else bias)
    bp = bp.reshape(E, 1, Dn)

    @jax.jit
    def forward(x, wp, bp):
        B = x.shape[1]
        Bp = _round_up(B, 8)
        xp = (jnp.pad(x, ((0, 0), (0, Bp - B), (0, Dk - Din)))
              if (Bp != B or Dk != Din) else x)

        out_dtype = x.dtype
        in_itemsize = xp.dtype.itemsize
        out_itemsize = jnp.dtype(out_dtype).itemsize
        use_scratch = out_dtype != jnp.float32

        # Grow tk preferentially (streams x/w without enlarging the resident
        # output/accumulator block); cap tn/tm at 512.
        tk = _pick_tile(Dk, 1024, 128)
        tn = _pick_tile(Dn, 512, 128)
        tm = _pick_tile(Bp, 512, 8)

        budget, vmem_limit = _vmem_budgets()
        e_blk = _pick_ensemble_block(E, tm, tk, tn, in_itemsize, out_itemsize,
                                     use_scratch, budget)

        # v7x shards the "parallel" grid axes across its 2 TensorCores: make
        # sure there are at least 2 parallel steps when the problem allows it.
        if (E // e_blk) * (Bp // tm) * (Dn // tn) == 1 and E > 1:
            for cand in range(E // 2, 0, -1):
                if E % cand == 0:
                    e_blk = cand
                    break

        grid = (E // e_blk, Bp // tm, Dn // tn, Dk // tk)

        cost = pl.CostEstimate(
            flops=2 * E * Bp * Dk * Dn,
            transcendentals=0,
            bytes_accessed=(
                in_itemsize * E * Bp * Dk * (Dn // tn)      # x re-streamed per N tile
                + in_itemsize * E * Dk * Dn * (Bp // tm)    # w re-streamed per M tile
                + in_itemsize * E * Dn * (Bp // tm)         # bias
                + out_itemsize * E * Bp * Dn),              # output written once
        )

        kernel = _fc_kernel_acc if use_scratch else _fc_kernel_f32
        scratch = ([pltpu.VMEM((e_blk, tm, tn), jnp.float32)]
                   if use_scratch else [])

        out_padded = pl.pallas_call(
            kernel,
            out_shape=jax.ShapeDtypeStruct((E, Bp, Dn), out_dtype),
            grid_spec=pltpu.PrefetchScalarGridSpec(
                num_scalar_prefetch=0,
                grid=grid,
                in_specs=[
                    pl.BlockSpec((e_blk, tm, tk), lambda e, m, n, k: (e, m, k)),
                    pl.BlockSpec((e_blk, tk, tn), lambda e, m, n, k: (e, k, n)),
                    pl.BlockSpec((e_blk, 1, tn), lambda e, m, n, k: (e, 0, n)),
                ],
                out_specs=pl.BlockSpec((e_blk, tm, tn),
                                       lambda e, m, n, k: (e, m, n)),
                scratch_shapes=scratch,
            ),
            compiler_params=pltpu.CompilerParams(
                dimension_semantics=("parallel", "parallel", "parallel",
                                     "arbitrary"),
                vmem_limit_bytes=vmem_limit,
            ),
            cost_estimate=cost,
        )(xp, wp, bp)

        if Bp != B or Dn != Dout:
            out_padded = out_padded[:, :B, :Dout]
        return out_padded

    return functools.partial(forward, wp=wp, bp=bp)


def fc_layer_forward(x, weight, bias):
    """Convenience one-shot wrapper (pads params per call; prefer make_fc_layer)."""
    return make_fc_layer(weight, bias)(x)


if __name__ == "__main__":
    ensemble_size = 4
    batch = 8
    input_dim = 32
    output_dim = 32

    key = jax.random.PRNGKey(0)
    kx, kw, kb = jax.random.split(key, 3)

    x = jax.random.normal(kx, (ensemble_size, batch, input_dim), dtype=jnp.float32)
    weight = jax.random.normal(
        kw, (ensemble_size, input_dim, output_dim), dtype=jnp.float32
    ) / jnp.sqrt(2.0 * input_dim)
    bias = jax.random.normal(kb, (ensemble_size, output_dim), dtype=jnp.float32) * 0.01

    fc_forward = make_fc_layer(weight, bias)   # params padded once here
    out = jax.block_until_ready(fc_forward(x))

    # Correctness check against plain-JAX reference of the PyTorch semantics.
    ref = jnp.maximum(jnp.einsum("ebi,eio->ebo", x, weight) + bias[:, None, :], 0.0)
    assert out.shape == (ensemble_size, batch, output_dim)
    assert jnp.allclose(out, ref, atol=1e-4, rtol=1e-4)

    print("KERNEL_OK")
</pallas_src>

<mosaic_0001>
module attributes {stable_mosaic.version = 11 : i64} {
  func.func @_fc_kernel_f32(%arg0: i32, %arg1: i32, %arg2: i32, %arg3: i32, %arg4: memref<2x8x128xf32, #tpu.memory_space<vmem>>, %arg5: memref<2x128x128xf32, #tpu.memory_space<vmem>>, %arg6: memref<2x1x128xf32, #tpu.memory_space<vmem>>, %arg7: memref<2x8x128xf32, #tpu.memory_space<vmem>>) attributes {dimension_semantics = [#tpu.dimension_semantics<parallel>, #tpu.dimension_semantics<parallel>, #tpu.dimension_semantics<parallel>, #tpu.dimension_semantics<arbitrary>], iteration_bounds = array<i64: 2, 1, 1, 1>, scalar_prefetch = 0 : i64, scratch_operands = 0 : i64, tpu.core_type = #tpu.core_type<tc>, window_params = [{transform_indices = @transform_0, window_bounds = array<i64: 2, 8, 128>}, {transform_indices = @transform_1, window_bounds = array<i64: 2, 128, 128>}, {transform_indices = @transform_2, window_bounds = array<i64: 2, 1, 128>}, {transform_indices = @transform_3, window_bounds = array<i64: 2, 8, 128>}]} {
    %c0_i32 = arith.constant 0 : i32
    %0 = arith.cmpi eq, %arg3, %c0_i32 : i32
    %1 = arith.extui %0 : i1 to i32
    %c0_i32_0 = arith.constant 0 : i32
    %2 = arith.cmpi ne, %1, %c0_i32_0 : i32
    scf.if %2 {
      %cst_14 = arith.constant 0.000000e+00 : f32
      %12 = vector.broadcast %cst_14 : f32 to vector<2x8x128xf32>
      %c0_15 = arith.constant 0 : index
      %c0_16 = arith.constant 0 : index
      %c0_17 = arith.constant 0 : index
      %13 = vector.load %arg7[%c0_15, %c0_16, %c0_17] : memref<2x8x128xf32, #tpu.memory_space<vmem>>, vector<2x8x128xf32>
      tpu.vector_store %arg7[%c0_15, %c0_16, %c0_17], %12 {strides = array<i32>} : memref<2x8x128xf32, #tpu.memory_space<vmem>>, vector<2x8x128xf32>,
    } else {
    }
    %c0 = arith.constant 0 : index
    %c0_1 = arith.constant 0 : index
    %c0_2 = arith.constant 0 : index
    %3 = vector.load %arg7[%c0, %c0_1, %c0_2] : memref<2x8x128xf32, #tpu.memory_space<vmem>>, vector<2x8x128xf32>
    %c0_3 = arith.constant 0 : index
    %c0_4 = arith.constant 0 : index
    %c0_5 = arith.constant 0 : index
    %4 = vector.load %arg4[%c0_3, %c0_4, %c0_5] : memref<2x8x128xf32, #tpu.memory_space<vmem>>, vector<2x8x128xf32>
    %c0_6 = arith.constant 0 : index
    %c0_7 = arith.constant 0 : index
    %c0_8 = arith.constant 0 : index
    %5 = vector.load %arg5[%c0_6, %c0_7, %c0_8] : memref<2x128x128xf32, #tpu.memory_space<vmem>>, vector<2x128x128xf32>
    "tpu.trace_start"() <{level = 10 : i32, message = "ebk,ekn->ebn"}> : () -> ()
    %cst = arith.constant dense<0.000000e+00> : vector<2x8x128xf32>
    %6 = tpu.matmul %4, %5, %cst {dimension_numbers = #tpu.dot_dimension_numbers<[2], [1], [1], [2], [0, 0, 0, 1, 1, 2], [0], [0]>} : vector<2x8x128xf32>, vector<2x128x128xf32>, vector<2x8x128xf32> -> vector<2x8x128xf32>
    "tpu.trace_stop"() : () -> ()
    %7 = arith.addf %3, %6 : vector<2x8x128xf32>
    %c0_9 = arith.constant 0 : index
    %c0_10 = arith.constant 0 : index
    %c0_11 = arith.constant 0 : index
    %8 = vector.load %arg7[%c0_9, %c0_10, %c0_11] : memref<2x8x128xf32, #tpu.memory_space<vmem>>, vector<2x8x128xf32>
    tpu.vector_store %arg7[%c0_9, %c0_10, %c0_11], %7 {strides = array<i32>} : memref<2x8x128xf32, #tpu.memory_space<vmem>>, vector<2x8x128xf32>,
    %c0_i32_12 = arith.constant 0 : i32
    %9 = arith.cmpi eq, %arg3, %c0_i32_12 : i32
    %10 = arith.extui %9 : i1 to i32
    %c0_i32_13 = arith.constant 0 : i32
    %11 = arith.cmpi ne, %10, %c0_i32_13 : i32
    scf.if %11 {
      %c0_14 = arith.constant 0 : index
      %c0_15 = arith.constant 0 : index
      %c0_16 = arith.constant 0 : index
      %12 = vector.load %arg7[%c0_14, %c0_15, %c0_16] : memref<2x8x128xf32, #tpu.memory_space<vmem>>, vector<2x8x128xf32>
      %c0_17 = arith.constant 0 : index
      %c0_18 = arith.constant 0 : index
      %c0_19 = arith.constant 0 : index
      %13 = vector.load %arg6[%c0_17, %c0_18, %c0_19] : memref<2x1x128xf32, #tpu.memory_space<vmem>>, vector<2x1x128xf32>
      %14 = vector.broadcast %13 : vector<2x1x128xf32> to vector<2x8x128xf32>
      %15 = arith.addf %12, %14 : vector<2x8x128xf32>
      %cst_20 = arith.constant 0.000000e+00 : f32
      %16 = vector.broadcast %cst_20 : f32 to vector<2x8x128xf32>
      %17 = arith.maximumf %15, %16 : vector<2x8x128xf32>
      %c0_21 = arith.constant 0 : index
      %c0_22 = arith.constant 0 : index
      %c0_23 = arith.constant 0 : index
      %18 = vector.load %arg7[%c0_21, %c0_22, %c0_23] : memref<2x8x128xf32, #tpu.memory_space<vmem>>, vector<2x8x128xf32>
      tpu.vector_store %arg7[%c0_21, %c0_22, %c0_23], %17 {strides = array<i32>} : memref<2x8x128xf32, #tpu.memory_space<vmem>>, vector<2x8x128xf32>,
    } else {
    }
    return
  }
  func.func @transform_0(%arg0: i32, %arg1: i32, %arg2: i32, %arg3: i32) -> (i32, i32, i32) {
    %c0_i32 = arith.constant 0 : i32
    return %arg0, %arg1, %arg3 : i32, i32, i32
  }
  func.func @transform_1(%arg0: i32, %arg1: i32, %arg2: i32, %arg3: i32) -> (i32, i32, i32) {
    %c0_i32 = arith.constant 0 : i32
    return %arg0, %arg3, %arg2 : i32, i32, i32
  }
  func.func @transform_2(%arg0: i32, %arg1: i32, %arg2: i32, %arg3: i32) -> (i32, i32, i32) {
    %c0_i32 = arith.constant 0 : i32
    %c0_i32_0 = arith.constant 0 : i32
    return %arg0, %c0_i32, %arg2 : i32, i32, i32
  }
  func.func @transform_3(%arg0: i32, %arg1: i32, %arg2: i32, %arg3: i32) -> (i32, i32, i32) {
    %c0_i32 = arith.constant 0 : i32
    return %arg0, %arg1, %arg2 : i32, i32, i32
  }
}

</mosaic_0001>

<llo_original>
// kernel: forward.1
$region0: #{forward.1}
  #allocation0 [shape = 'u32[]', space=smem, size = 0x4, offset = 0x4, fixed_abs, tag = 'smem constant byte address 0x4 - core index']
  #allocation1 [shape = 'u32[144,128]{1,0:T(1,128)}', space=vmem, size = 0x12000, scoped, tag = 'internal scratch']
  %s0 = inlined_call_operand.vmem [shape: f32[4,8,128], index: 0, kind: input, shape index: {}]
  %s1 = inlined_call_operand.hbm [shape: f32[4,128,128], index: 1, kind: input, shape index: {}]
  %s2 = inlined_call_operand.vmem [shape: f32[4,1,128], index: 2, kind: input, shape index: {}]
  %s3 = inlined_call_operand.hbm [shape: f32[4,8,128], index: 3, kind: output, shape index: {}]
  %s4 = sld [smem:[#allocation0]]
  $region57: #{forward.1} parent=0
    _
  %s6 = ssub.s32 1, %s4
  %s7 = scalar_select 0, %s6, %s4
  $region1: #{forward.1} parent=0
    #allocation2 [shape = 'u8[262144]{0}', space=vmem, size = 0x40000, scoped, tag = 'input window, operand 1']
    #allocation3 [shape = 's32[2]{0}', space=sflag, size = 0x8, scoped, tag = 'scoped memory for forward.1']
    #allocation4 [shape = 's32[2]{0}', space=sflag, size = 0x8, scoped, tag = 'scoped memory for forward.1']
    #allocation5 [shape = 'u8[16384]{0}', space=vmem, size = 0x4000, scoped, tag = 'output window, operand 0']
    %8 = vsyncpa [#allocation3], 0
    %s9 = scalar_lea.sflag [#allocation3], 1
    %10 = vsyncpa %s9, 0
    %11 = vsyncpa [#allocation4], 0
    %s12 = scalar_lea.sflag [#allocation4], 1
    %13 = vsyncpa %s12, 0
    loop: start=0, step=1, limit=4
    $region2: #{forward.1} parent=1 // loop_pre_header
      _
    $region3: #{forward.1} parent=1 // loop_header
      %s15 = sphi 0, %s19
      %p16 = scmp.ge.s32.totalorder %s15, 4
      %s22 = sphi 0, %s48
      %s23 = sphi 0, %s44
      %s24 = sphi 0, %s40
      %s25 = sphi 0, %s36
      %s26 = sphi 0, %s22
      %s27 = sphi 0, %s23
      %s28 = sphi 0, %s24
      %s29 = sphi 0, %s25
      %s30 = sphi 0, %s26
      %s31 = sphi 0, %s27
      %s32 = sphi 0, %s28
      %s33 = sphi 0, %s29
      %s55 = sphi 0, %s57
      %s58 = sphi 0, %s55
      %s59 = sphi 0, %s58
      %s75 = sphi 0, %s59
      %s85 = sphi 0, %s87
      %s88 = sphi 0, %s85
      %s89 = sphi 0, %s88
      %s105 = sphi 0, %s89
      %s113 = sphi 0, %s115
      %s116 = sphi 0, %s113
      %s117 = sphi 0, %s116
      %s133 = sphi 0, %s117
      %s143 = sphi 0, %s145
      %s146 = sphi 0, %s143
      %s147 = sphi 0, %s146
      %s163 = sphi 0, %s147
    $region4: #{forward.1} parent=1 // loop_header_branch
      %18 = sbr.rel (%p16) target = $region8
    $region5: #{forward.1} parent=1 // loop_body
      %s20 = ssub.s32 %s15, 1
      %s21 = ssub.s32 %s15, 2
      %s34 = sadd.s32 1, %s25
      %p35 = scmp.ge.s32.totalorder %s34, 1
      %s36 = scalar_select %p35, 0, %s34
      %s37 = sadd.s32 1, %s24
      %s38 = scalar_select %p35, %s37, %s24
      %p39 = scmp.ge.s32.totalorder %s38, 1
      %s40 = scalar_select %p39, 0, %s38
      %s41 = sadd.s32 1, %s23
      %s42 = scalar_select %p39, %s41, %s23
      %p43 = scmp.ge.s32.totalorder %s42, 1
      %s44 = scalar_select %p43, 0, %s42
      %s45 = sadd.s32 1, %s22
      %s46 = scalar_select %p43, %s45, %s22
      %p47 = scmp.ge.s32.totalorder %s46, 2
      %s48 = scalar_select %p47, 0, %s46
      %s49 = ssub.s32 %s22, %s48
      %s50 = ssub.s32 %s23, %s44
      %s51 = sor.u32 %s49, %s50
      %s52 = ssub.s32 %s25, %s36
      %s53 = sor.u32 %s51, %s52
      %p54 = scmp.eq.s32.totalorder %s53, 0
      %s56 = sadd.s32 %s55, 1
      %s57 = scalar_select %p54, %s55, %s56
      %p60 = pneg %p54
      %p61 = scmp.eq.s32.totalorder %s15, 1
      %p62 = por %p60, %p61
      %p63 = scmp.ne.s32.totalorder %s55, %s58
      %p64 = scmp.eq.s32.totalorder %s15, 0
      %p65 = por %p63, %p64
      %p66 = scmp.ne.s32.totalorder %s55, %s58
      %p67 = scmp.eq.s32.totalorder %s20, 1
      %p68 = por %p66, %p67
      %p69 = scmp.ne.s32.totalorder %s58, %s59
      %p70 = scmp.eq.s32.totalorder %s20, 0
      %p71 = por %p69, %p70
      %p72 = scmp.ne.s32.totalorder %s58, %s59
      %p73 = scmp.eq.s32.totalorder %s21, 1
      %p74 = por %p72, %p73
      %p76 = scmp.ne.s32.totalorder %s59, %s75
      %p77 = scmp.eq.s32.totalorder %s21, 0
      %p78 = por %p76, %p77
      %s79 = ssub.s32 %s22, %s48
      %s80 = ssub.s32 %s25, %s36
      %s81 = sor.u32 %s79, %s80
      %s82 = ssub.s32 %s24, %s40
      %s83 = sor.u32 %s81, %s82
      %p84 = scmp.eq.s32.totalorder %s83, 0
      %s86 = sadd.s32 %s85, 1
      %s87 = scalar_select %p84, %s85, %s86
      %p90 = pneg %p84
      %p91 = scmp.eq.s32.totalorder %s15, 1
      %p92 = por %p90, %p91
      %p93 = scmp.ne.s32.totalorder %s85, %s88
      %p94 = scmp.eq.s32.totalorder %s15, 0
      %p95 = por %p93, %p94
      %p96 = scmp.ne.s32.totalorder %s85, %s88
      %p97 = scmp.eq.s32.totalorder %s20, 1
      %p98 = por %p96, %p97
      %p99 = scmp.ne.s32.totalorder %s88, %s89
      %p100 = scmp.eq.s32.totalorder %s20, 0
      %p101 = por %p99, %p100
      %p102 = scmp.ne.s32.totalorder %s88, %s89
      %p103 = scmp.eq.s32.totalorder %s21, 1
      %p104 = por %p102, %p103
      %p106 = scmp.ne.s32.totalorder %s89, %s105
      %p107 = scmp.eq.s32.totalorder %s21, 0
      %p108 = por %p106, %p107
      %s109 = ssub.s32 %s22, %s48
      %s110 = ssub.s32 %s24, %s40
      %s111 = sor.u32 %s109, %s110
      %p112 = scmp.eq.s32.totalorder %s111, 0
      %s114 = sadd.s32 %s113, 1
      %s115 = scalar_select %p112, %s113, %s114
      %p118 = pneg %p112
      %p119 = scmp.eq.s32.totalorder %s15, 1
      %p120 = por %p118, %p119
      %p121 = scmp.ne.s32.totalorder %s113, %s116
      %p122 = scmp.eq.s32.totalorder %s15, 0
      %p123 = por %p121, %p122
      %p124 = scmp.ne.s32.totalorder %s113, %s116
      %p125 = scmp.eq.s32.totalorder %s20, 1
      %p126 = por %p124, %p125
      %p127 = scmp.ne.s32.totalorder %s116, %s117
      %p128 = scmp.eq.s32.totalorder %s20, 0
      %p129 = por %p127, %p128
      %p130 = scmp.ne.s32.totalorder %s116, %s117
      %p131 = scmp.eq.s32.totalorder %s21, 1
      %p132 = por %p130, %p131
      %p134 = scmp.ne.s32.totalorder %s117, %s133
      %p135 = scmp.eq.s32.totalorder %s21, 0
      %p136 = por %p134, %p135
      %s137 = ssub.s32 %s22, %s48
      %s138 = ssub.s32 %s23, %s44
      %s139 = sor.u32 %s137, %s138
      %s140 = ssub.s32 %s24, %s40
      %s141 = sor.u32 %s139, %s140
      %p142 = scmp.eq.s32.totalorder %s141, 0
      %s144 = sadd.s32 %s143, 1
      %s145 = scalar_select %p142, %s143, %s144
      %p148 = pneg %p142
      %p149 = scmp.eq.s32.totalorder %s15, 1
      %p150 = por %p148, %p149
      %p151 = scmp.ne.s32.totalorder %s143, %s146
      %p152 = scmp.eq.s32.totalorder %s15, 0
      %p153 = por %p151, %p152
      %p154 = scmp.ne.s32.totalorder %s143, %s146
      %p155 = scmp.eq.s32.totalorder %s20, 1
      %p156 = por %p154, %p155
      %p157 = scmp.ne.s32.totalorder %s146, %s147
      %p158 = scmp.eq.s32.totalorder %s20, 0
      %p159 = por %p157, %p158
      %p160 = scmp.ne.s32.totalorder %s146, %s147
      %p161 = scmp.eq.s32.totalorder %s21, 1
      %p162 = por %p160, %p161
      %p164 = scmp.ne.s32.totalorder %s147, %s163
      %p165 = scmp.eq.s32.totalorder %s21, 0
      %p166 = por %p164, %p165
      %p167 = scmp.le.s32.totalorder 1, %s15
      %p168 = scmp.lt.s32.totalorder %s15, 3
      %p169 = pnand %p167, %p168
      %p170 = pneg %p169
      // Predicated region
      $region9: #{forward.1} parent=5 // pred_check
        _
      $region10: #{forward.1} parent=5 // pred_check_branch
        %172 = sbr.rel (%p169) target = $region12
      $region11: #{forward.1} parent=5 // pred_region
        %s173 = ssub.s32 %s15, 1
      $region12: #{forward.1} parent=5 // pred_fallthru
        _
      %p174 = scmp.lt.s32.totalorder %s15, 2
      // Predicated region
      $region13: #{forward.1} parent=5 // pred_check
        %p175 = pneg %p174
      $region14: #{forward.1} parent=5 // pred_check_branch
        %177 = sbr.rel (%p175) target = $region16
      $region15: #{forward.1} parent=5 // pred_region
        // Predicated region
        $region17: #{forward.1} parent=15 // pred_check
          %p178 = pneg %p65
        $region18: #{forward.1} parent=15 // pred_check_branch
          %180 = sbr.rel (%p178) target = $region20
        $region19: #{forward.1} parent=15 // pred_region
          %s181 = smul.u32 2, %s22
          %p182 = scmp.lt.s32.totalorder %s181, 3
          %s183 = scalar_select %p182, %s181, 3
          %p184 = scmp.lt.s32.totalorder %s23, 0
          %s185 = scalar_select %p184, %s23, 0
          %p186 = scmp.lt.s32.totalorder %s25, 0
          %s187 = scalar_select %p186, %s25, 0
          %s188 = sadd.s32 %s187, %s185
          %s189 = sadd.s32 %s188, %s183
          %s190 = smul.addr %s189, 8
          %s191 = scalar_lea.vmem %s0, %s190
          %s192 = smul.u32 2, %s22
        $region20: #{forward.1} parent=15 // pred_fallthru
          _
        // Predicated region
        $region21: #{forward.1} parent=15 // pred_check
          %p193 = pneg %p95
        $region22: #{forward.1} parent=15 // pred_check_branch
          %195 = sbr.rel (%p193) target = $region24
        $region23: #{forward.1} parent=15 // pred_region
          %s196 = sand.u32 %s85, 1
          %s197 = scalar_lea.sflag [#allocation3], %s196
          %s198 = sand.u32 %s85, 1
          %s199 = smul.addr %s198, 256
          %s200 = scalar_lea.vmem [#allocation2], %s199
          %s201 = smul.u32 2, %s22
          %s202 = smul.u32 16, %s25
          %s204 = ssub.s32 4096, 4096
          %205 = vsyncadd %s197, %s204
          %s206 = sadd.s32 %s24, %s202
          %s207 = smul.addr %s201, 16
          %s208 = sadd.s32 %s206, %s207
          %s209 = smul.addr %s208, 128
          %s210 = scalar_lea.hbm %s1, %s209
          %s211 = sshll.u32 %s200, 4
          %s212 = int_to_ptr.vmem [resolvable:$true] %s211
          %217 = dma.hbm_to_vmem [thread:$0]  %s210, 4096, %s212, %s197, 128, 128, 8
        $region24: #{forward.1} parent=15 // pred_fallthru
          _
        // Predicated region
        $region25: #{forward.1} parent=15 // pred_check
          %p218 = pneg %p123
        $region26: #{forward.1} parent=15 // pred_check_branch
          %220 = sbr.rel (%p218) target = $region28
        $region27: #{forward.1} parent=15 // pred_region
          %s221 = smul.u32 2, %s22
          %p222 = scmp.lt.s32.totalorder %s221, 3
          %s223 = scalar_select %p222, %s221, 3
          %p224 = scmp.lt.s32.totalorder %s24, 0
          %s225 = scalar_select %p224, %s24, 0
          %s226 = sadd.s32 %s225, %s223
          %s227 = scalar_lea.vmem %s2, %s226
          %s228 = smul.u32 2, %s22
        $region28: #{forward.1} parent=15 // pred_fallthru
          _
      $region16: #{forward.1} parent=5 // pred_fallthru
        _
      %p229 = scmp.le.s32.totalorder 1, %s15
      %p230 = scmp.lt.s32.totalorder %s15, 3
      %p231 = pnand %p229, %p230
      %p232 = pneg %p231
      // Predicated region
      $region29: #{forward.1} parent=5 // pred_check
        _
      $region30: #{forward.1} parent=5 // pred_check_branch
        %234 = sbr.rel (%p231) target = $region32
      $region31: #{forward.1} parent=5 // pred_region
        %s235 = ssub.s32 %s15, 1
        %s236 = sand.u32 %s88, 1
        %s237 = scalar_lea.sflag [#allocation3], %s236
        %s238 = sand.u32 %s88, 1
        %s239 = smul.addr %s238, 256
        %s240 = scalar_lea.vmem [#allocation2], %s239
        // Predicated region
        $region33: #{forward.1} parent=31 // pred_check
          %p241 = pneg %p101
        $region34: #{forward.1} parent=31 // pred_check_branch
          %243 = sbr.rel (%p241) target = $region36
        $region35: #{forward.1} parent=31 // pred_region
          %244 = dma.done %s237, 4096
        $region36: #{forward.1} parent=31 // pred_fallthru
          _
        %s245 = smul.u32 2, %s26
        %p246 = scmp.lt.s32.totalorder %s245, 3
        %s247 = scalar_select %p246, %s245, 3
        %p248 = scmp.lt.s32.totalorder %s27, 0
        %s249 = scalar_select %p248, %s27, 0
        %p250 = scmp.lt.s32.totalorder %s29, 0
        %s251 = scalar_select %p250, %s29, 0
        %s252 = sadd.s32 %s251, %s249
        %s253 = sadd.s32 %s252, %s247
        %s254 = smul.addr %s253, 8
        %s255 = scalar_lea.vmem %s0, %s254
        %p256 = pneg %p71
        %p257 = pneg %p68
        %s258 = sand.u32 %s88, 1
        %s259 = scalar_lea.sflag [#allocation3], %s258
        %s260 = sand.u32 %s88, 1
        %s261 = smul.addr %s260, 256
        %s262 = scalar_lea.vmem [#allocation2], %s261
        %p263 = pneg %p101
        %p264 = pneg %p98
        %s265 = smul.u32 2, %s26
        %p266 = scmp.lt.s32.totalorder %s265, 3
        %s267 = scalar_select %p266, %s265, 3
        %p268 = scmp.lt.s32.totalorder %s28, 0
        %s269 = scalar_select %p268, %s28, 0
        %s270 = sadd.s32 %s269, %s267
        %s271 = scalar_lea.vmem %s2, %s270
        %p272 = pneg %p129
        %p273 = pneg %p126
        %p274 = pneg %p159
        %p275 = pneg %p156
        %s276 = sand.u32 %s146, 1
        %s277 = scalar_lea.sflag [#allocation4], %s276
        %s278 = sand.u32 %s146, 1
        %s279 = smul.addr %s278, 16
        %s280 = scalar_lea.vmem [#allocation5], %s279
        %s281 = smul.u32 2, %s26
        %p282 = scmp.lt.s32.totalorder %s281, 3
        %s283 = scalar_select %p282, %s281, 3
        %p284 = scmp.lt.s32.totalorder %s27, 0
        %s285 = scalar_select %p284, %s27, 0
        %p286 = scmp.lt.s32.totalorder %s29, 0
        %s287 = scalar_select %p286, %s29, 0
        %s288 = sadd.s32 %s287, %s285
        %s289 = sadd.s32 %s288, %s283
        %s290 = smul.addr %s289, 8
        %s291 = scalar_lea.vmem %s0, %s290
        %s292 = smul.u32 2, %s26
        %s293 = smul.u32 2, %s26
        %s294 = smul.u32 16, %s29
        %s295 = smul.u32 2, %s26
        %p296 = scmp.lt.s32.totalorder %s295, 3
        %s297 = scalar_select %p296, %s295, 3
        %p298 = scmp.lt.s32.totalorder %s28, 0
        %s299 = scalar_select %p298, %s28, 0
        %s300 = sadd.s32 %s299, %s297
        %s301 = scalar_lea.vmem %s2, %s300
        %s302 = smul.u32 2, %s26
        %s303 = smul.u32 2, %s26
        %p304 = scmp.eq.s32.totalorder %s29, 0
        // Predicated region
        $region37: #{forward.1} parent=31 // pred_check
          %p305 = pneg %p304
        $region38: #{forward.1} parent=31 // pred_check_branch
          %307 = sbr.rel (%p305) target = $region40
        $region39: #{forward.1} parent=31 // pred_region
          %308 = vst [vmem:[%s280] sm:$0xff] 0.0
          %309 = vst [vmem:[%s280 + $0x8] sm:$0xff] 0.0
        $region40: #{forward.1} parent=31 // pred_fallthru
          _
        %v310 = vld [vmem:[%s280] sm:$0xff]
        %v311 = vld [vmem:[%s280 + $0x8] sm:$0xff]
        %v312 = vld [vmem:[%s291] sm:$0xff]
        %v313 = vld [vmem:[%s291 + $0x8] sm:$0xff]
        %v314 = vld [vmem:[%s240] sm:$0xff]
        %v315 = vld [vmem:[%s240 + $0x8] sm:$0xff]
        %v316 = vld [vmem:[%s240 + $0x10] sm:$0xff]
        %v317 = vld [vmem:[%s240 + $0x18] sm:$0xff]
        %v318 = vld [vmem:[%s240 + $0x20] sm:$0xff]
        %v319 = vld [vmem:[%s240 + $0x28] sm:$0xff]
        %v320 = vld [vmem:[%s240 + $0x30] sm:$0xff]
        %v321 = vld [vmem:[%s240 + $0x38] sm:$0xff]
        %v322 = vld [vmem:[%s240 + $0x40] sm:$0xff]
        %v323 = vld [vmem:[%s240 + $0x48] sm:$0xff]
        %v324 = vld [vmem:[%s240 + $0x50] sm:$0xff]
        %v325 = vld [vmem:[%s240 + $0x58] sm:$0xff]
        %v326 = vld [vmem:[%s240 + $0x60] sm:$0xff]
        %v327 = vld [vmem:[%s240 + $0x68] sm:$0xff]
        %v328 = vld [vmem:[%s240 + $0x70] sm:$0xff]
        %v329 = vld [vmem:[%s240 + $0x78] sm:$0xff]
        %v330 = vld [vmem:[%s240 + $0x80] sm:$0xff]
        %v331 = vld [vmem:[%s240 + $0x88] sm:$0xff]
        %v332 = vld [vmem:[%s240 + $0x90] sm:$0xff]
        %v333 = vld [vmem:[%s240 + $0x98] sm:$0xff]
        %v334 = vld [vmem:[%s240 + $0xa0] sm:$0xff]
        %v335 = vld [vmem:[%s240 + $0xa8] sm:$0xff]
        %v336 = vld [vmem:[%s240 + $0xb0] sm:$0xff]
        %v337 = vld [vmem:[%s240 + $0xb8] sm:$0xff]
        %v338 = vld [vmem:[%s240 + $0xc0] sm:$0xff]
        %v339 = vld [vmem:[%s240 + $0xc8] sm:$0xff]
        %v340 = vld [vmem:[%s240 + $0xd0] sm:$0xff]
        %v341 = vld [vmem:[%s240 + $0xd8] sm:$0xff]
        %v342 = vld [vmem:[%s240 + $0xe0] sm:$0xff]
        %v343 = vld [vmem:[%s240 + $0xe8] sm:$0xff]
        %v344 = vld [vmem:[%s240 + $0xf0] sm:$0xff]
        %v345 = vld [vmem:[%s240 + $0xf8] sm:$0xff]
        %346 = vmatprep.subr.mxu0 0.0
        %347 = vmatpush1.msra.mxu0 %v329
        %348 = vmatprep.subr.mxu0 0.0
        %349 = vmatpush1.msra.mxu0 %v328
        %350 = vmatprep.subr.mxu0 0.0
        %351 = vmatpush1.msra.mxu0 %v327
        %352 = vmatprep.subr.mxu0 0.0
        %353 = vmatpush1.msra.mxu0 %v326
        %354 = vmatprep.subr.mxu0 0.0
        %355 = vmatpush1.msra.mxu0 %v325
        %356 = vmatprep.subr.mxu0 0.0
        %357 = vmatpush1.msra.mxu0 %v324
        %358 = vmatprep.subr.mxu0 0.0
        %359 = vmatpush1.msra.mxu0 %v323
        %360 = vmatprep.subr.mxu0 0.0
        %361 = vmatpush1.msra.mxu0 %v322
        %362 = vmatprep.subr.mxu0 0.0
        %363 = vmatpush1.msra.mxu0 %v321
        %364 = vmatprep.subr.mxu0 0.0
        %365 = vmatpush1.msra.mxu0 %v320
        %366 = vmatprep.subr.mxu0 0.0
        %367 = vmatpush1.msra.mxu0 %v319
        %368 = vmatprep.subr.mxu0 0.0
        %369 = vmatpush1.msra.mxu0 %v318
        %370 = vmatprep.subr.mxu0 0.0
        %371 = vmatpush1.msra.mxu0 %v317
        %372 = vmatprep.subr.mxu0 0.0
        %373 = vmatpush1.msra.mxu0 %v316
        %374 = vmatprep.subr.mxu0 0.0
        %375 = vmatpush1.msra.mxu0 %v315
        %376 = vmatprep.subr.mxu0 0.0
        %377 = vmatpush1.msra.mxu0 %v314
        %378 = vmatprep.subr.mxu0 0.0
        %379 = vmatpush2.msra.mxu0 0.0
        %380 = vmatprep.subr.mxu0 0.0
        %381 = vmatpush2.msra.mxu0 0.0
        %382 = vmatprep.subr.mxu0 0.0
        %383 = vmatpush2.msra.mxu0 0.0
        %384 = vmatprep.subr.mxu0 0.0
        %385 = vmatpush2.msra.mxu0 0.0
        %386 = vmatprep.subr.mxu0 0.0
        %387 = vmatpush2.msra.mxu0 0.0
        %388 = vmatprep.subr.mxu0 0.0
        %389 = vmatpush2.msra.mxu0 0.0
        %390 = vmatprep.subr.mxu0 0.0
        %391 = vmatpush2.msra.mxu0 0.0
        %392 = vmatprep.subr.mxu0 0.0
        %393 = vmatpush2.msra.mxu0 0.0
        %394 = vmatprep.subr.mxu0 0.0
        %395 = vmatpush2.msra.mxu0 0.0
        %396 = vmatprep.subr.mxu0 0.0
        %397 = vmatpush2.msra.mxu0 0.0
        %398 = vmatprep.subr.mxu0 0.0
        %399 = vmatpush2.msra.mxu0 0.0
        %400 = vmatprep.subr.mxu0 0.0
        %401 = vmatpush2.msra.mxu0 0.0
        %402 = vmatprep.subr.mxu0 0.0
        %403 = vmatpush2.msra.mxu0 0.0
        %404 = vmatprep.subr.mxu0 0.0
        %405 = vmatpush2.msra.mxu0 0.0
        %406 = vmatprep.subr.mxu0 0.0
        %407 = vmatpush2.msra.mxu0 0.0
        %408 = vmatprep.subr.mxu0 0.0
        %409 = vmatpush2.msra.mxu0 0.0
        %410 = vmatprep.mubr.f32.mxu0 0.0
        %411 = vmatmul.mubr.f32.gmra.mxu0 %v312
        %v412 = vpop.f32.mrf.mxu0
        %v413 = vadd.f32 0.0, %v412
        %v414 = vpop.f32.mrf.mxu0
        %415 = vdwg.mxu0
        %416 = vmatprep.subr.mxu0 0.0
        %417 = vmatpush1.msra.mxu0 %v345
        %418 = vmatprep.subr.mxu0 0.0
        %419 = vmatpush1.msra.mxu0 %v344
        %420 = vmatprep.subr.mxu0 0.0
        %421 = vmatpush1.msra.mxu0 %v343
        %422 = vmatprep.subr.mxu0 0.0
        %423 = vmatpush1.msra.mxu0 %v342
        %424 = vmatprep.subr.mxu0 0.0
        %425 = vmatpush1.msra.mxu0 %v341
        %426 = vmatprep.subr.mxu0 0.0
        %427 = vmatpush1.msra.mxu0 %v340
        %428 = vmatprep.subr.mxu0 0.0
        %429 = vmatpush1.msra.mxu0 %v339
        %430 = vmatprep.subr.mxu0 0.0
        %431 = vmatpush1.msra.mxu0 %v338
        %432 = vmatprep.subr.mxu0 0.0
        %433 = vmatpush1.msra.mxu0 %v337
        %434 = vmatprep.subr.mxu0 0.0
        %435 = vmatpush1.msra.mxu0 %v336
        %436 = vmatprep.subr.mxu0 0.0
        %437 = vmatpush1.msra.mxu0 %v335
        %438 = vmatprep.subr.mxu0 0.0
        %439 = vmatpush1.msra.mxu0 %v334
        %440 = vmatprep.subr.mxu0 0.0
        %441 = vmatpush1.msra.mxu0 %v333
        %442 = vmatprep.subr.mxu0 0.0
        %443 = vmatpush1.msra.mxu0 %v332
        %444 = vmatprep.subr.mxu0 0.0
        %445 = vmatpush1.msra.mxu0 %v331
        %446 = vmatprep.subr.mxu0 0.0
        %447 = vmatpush1.msra.mxu0 %v330
        %448 = vmatprep.subr.mxu0 0.0
        %449 = vmatpush2.msra.mxu0 0.0
        %450 = vmatprep.subr.mxu0 0.0
        %451 = vmatpush2.msra.mxu0 0.0
        %452 = vmatprep.subr.mxu0 0.0
        %453 = vmatpush2.msra.mxu0 0.0
        %454 = vmatprep.subr.mxu0 0.0
        %455 = vmatpush2.msra.mxu0 0.0
        %456 = vmatprep.subr.mxu0 0.0
        %457 = vmatpush2.msra.mxu0 0.0
        %458 = vmatprep.subr.mxu0 0.0
        %459 = vmatpush2.msra.mxu0 0.0
        %460 = vmatprep.subr.mxu0 0.0
        %461 = vmatpush2.msra.mxu0 0.0
        %462 = vmatprep.subr.mxu0 0.0
        %463 = vmatpush2.msra.mxu0 0.0
        %464 = vmatprep.subr.mxu0 0.0
        %465 = vmatpush2.msra.mxu0 0.0
        %466 = vmatprep.subr.mxu0 0.0
        %467 = vmatpush2.msra.mxu0 0.0
        %468 = vmatprep.subr.mxu0 0.0
        %469 = vmatpush2.msra.mxu0 0.0
        %470 = vmatprep.subr.mxu0 0.0
        %471 = vmatpush2.msra.mxu0 0.0
        %472 = vmatprep.subr.mxu0 0.0
        %473 = vmatpush2.msra.mxu0 0.0
        %474 = vmatprep.subr.mxu0 0.0
        %475 = vmatpush2.msra.mxu0 0.0
        %476 = vmatprep.subr.mxu0 0.0
        %477 = vmatpush2.msra.mxu0 0.0
        %478 = vmatprep.subr.mxu0 0.0
        %479 = vmatpush2.msra.mxu0 0.0
        %480 = vmatprep.mubr.f32.mxu0 0.0
        %481 = vmatmul.mubr.f32.gmra.mxu0 %v313
        %v482 = vpop.f32.mrf.mxu0
        %v483 = vadd.f32 0.0, %v482
        %v484 = vpop.f32.mrf.mxu0
        %485 = vdwg.mxu0
        %v486 = vadd.f32 %v310, %v413
        %v487 = vadd.f32 %v311, %v483
        %488 = vst [vmem:[%s280] sm:$0xff] %v486
        %489 = vst [vmem:[%s280 + $0x8] sm:$0xff] %v487
        // Predicated region
        $region41: #{forward.1} parent=31 // pred_check
          %p490 = pneg %p304
        $region42: #{forward.1} parent=31 // pred_check_branch
          %492 = sbr.rel (%p490) target = $region44
        $region43: #{forward.1} parent=31 // pred_region
          %v493 = vld [vmem:[%s280] sm:$0xff]
          %v494 = vld [vmem:[%s280 + $0x8] sm:$0xff]
          %v495 = vld [vmem:[%s301] sm:$0x1]
          %v496 = vld [vmem:[%s301 + $0x1] sm:$0x1]
          %v499 = vlaneseq
          %v500 = vshrl.u32 %v499, 7
          %v501 = vsub.s32 0, %v500
          %v502 = vrot.slane %v495, %v501
          %v503 = vlaneseq
          %v504 = vshrl.u32 %v503, 7
          %v505 = vsub.s32 0, %v504
          %v506 = vrot.slane %v496, %v505
          %v509 = vadd.f32 %v493, %v502
          %v510 = vadd.f32 %v494, %v506
          %v511 = vmax.f32 %v509, 0.0
          %v512 = vmax.f32 %v510, 0.0
          %513 = vst [vmem:[%s280] sm:$0xff] %v511
          %514 = vst [vmem:[%s280 + $0x8] sm:$0xff] %v512
        $region44: #{forward.1} parent=31 // pred_fallthru
          _
        %s515 = sand.u32 %s146, 1
        %s516 = scalar_lea.sflag [#allocation4], %s515
        %s517 = sand.u32 %s146, 1
        %s518 = smul.addr %s517, 16
        %s519 = scalar_lea.vmem [#allocation5], %s518
        // Predicated region
        $region45: #{forward.1} parent=31 // pred_check
          %p520 = pneg %p156
        $region46: #{forward.1} parent=31 // pred_check_branch
          %522 = sbr.rel (%p520) target = $region48
        $region47: #{forward.1} parent=31 // pred_region
          %s523 = smul.u32 2, %s26
          %s525 = ssub.s32 256, 256
          %526 = vsyncadd %s516, %s525
          %s527 = sadd.s32 %s28, %s27
          %s528 = sadd.s32 %s527, %s523
          %s529 = smul.addr %s528, 128
          %s530 = scalar_lea.hbm %s3, %s529
          %s531 = sshll.u32 %s519, 4
          %s532 = int_to_ptr.vmem [resolvable:$true] %s531
          %537 = dma.vmem_to_hbm [thread:$0]  %s532, 256, %s530, %s516, 128, 128, 8
        $region48: #{forward.1} parent=31 // pred_fallthru
          _
      $region32: #{forward.1} parent=5 // pred_fallthru
        _
      %p538 = scmp.le.s32.totalorder 2, %s15
      // Predicated region
      $region49: #{forward.1} parent=5 // pred_check
        %p539 = pneg %p538
      $region50: #{forward.1} parent=5 // pred_check_branch
        %541 = sbr.rel (%p539) target = $region52
      $region51: #{forward.1} parent=5 // pred_region
        %s542 = ssub.s32 %s15, 2
        // Predicated region
        $region53: #{forward.1} parent=51 // pred_check
          %p543 = pneg %p162
        $region54: #{forward.1} parent=51 // pred_check_branch
          %545 = sbr.rel (%p543) target = $region56
        $region55: #{forward.1} parent=51 // pred_region
          %s546 = sand.u32 %s147, 1
          %s547 = scalar_lea.sflag [#allocation4], %s546
          %s548 = sand.u32 %s147, 1
          %s549 = smul.addr %s548, 16
          %s550 = scalar_lea.vmem [#allocation5], %s549
          %551 = dma.done %s547, 256
        $region56: #{forward.1} parent=51 // pred_fallthru
          _
      $region52: #{forward.1} parent=5 // pred_fallthru
        _
    $region6: #{forward.1} parent=1 // loop_footer
      %s19 = sadd.s32 1, %s15
    $region7: #{forward.1} parent=1 // loop_footer_branch
      %14 = sbr.rel target = $region3
    $region8: #{forward.1} parent=1 // loop_exit
      _
    %552 = vsyncpa [#allocation3], 1
    %s553 = scalar_lea.sflag [#allocation3], 1
    %554 = vsyncpa %s553, 1
    %555 = vsyncpa [#allocation4], 1
    %s556 = scalar_lea.sflag [#allocation4], 1
    %557 = vsyncpa %s556, 1

</llo_original>
